<compile_context>
chip_gen: v7x
topology: tpu7x:2x2x1
jax: 0.10.0
libtpu: 0.0.40
codegen_flags: <defaults>
</compile_context>

<pallas_src>
import functools

import jax
import jax.numpy as jnp
from jax.experimental import pallas as pl
from jax.experimental.pallas import tpu as pltpu


def _round_up(x, m):
    return ((x + m - 1) // m) * m


def _focal_ce_partial_kernel(logits_ref, target_ref, out_ref, acc_ref, *,
                             n_rows, block_n, chunk_n, blocks_per_split):
    """Accumulates sum_i [logsumexp(logits_i) - logits_i[target_i]] over the
    rows owned by this core-split; writes the per-split partial at the last
    step of the (inner, "arbitrary") block axis."""
    split = pl.program_id(0)     # core-split index ("parallel" axis)
    blk = pl.program_id(1)       # row-block index within the split ("arbitrary")

    @pl.when(blk == 0)
    def _():
        acc_ref[...] = jnp.zeros_like(acc_ref)

    c = logits_ref.shape[1]
    base_row = (split * blocks_per_split + blk) * block_n
    n_chunks = block_n // chunk_n
    sub_align = 16 if (chunk_n % 16 == 0) else 8

    # Inner chunk loop keeps the full-tile f32 temporaries bounded by chunk_n
    # (not block_n), so the big streaming block only costs its 2x input +
    # 2x target VMEM buffers.
    @pl.loop(0, n_chunks)
    def _(ch):
        r0 = pl.multiple_of(ch * chunk_n, sub_align)
        x = logits_ref[pl.ds(r0, chunk_n), :].astype(jnp.float32)       # (chunk, C)

        # Numerically stable per-row logsumexp (lane-axis reductions -> XLU,
        # exp -> EUP slot).
        row_max = jnp.max(x, axis=-1, keepdims=True)                    # (chunk, 1)
        lse = jnp.log(jnp.sum(jnp.exp(x - row_max), axis=-1,
                              keepdims=True)) + row_max                  # (chunk, 1)

        # Target-class logit via lane-iota == target (no dynamic gather).
        tgt = target_ref[pl.ds(r0, chunk_n), :]                          # (chunk, 1) i32
        col_ids = jax.lax.broadcasted_iota(jnp.int32, (chunk_n, c), 1)
        tgt_logit = jnp.sum(jnp.where(col_ids == tgt, x, 0.0),
                            axis=-1, keepdims=True)                      # (chunk, 1)

        # Mask padded tail rows (global row index must be < n_rows).
        row_ids = (jax.lax.broadcasted_iota(jnp.int32, (chunk_n, 1), 0)
                   + (base_row + r0))
        ce_rows = jnp.where(row_ids < n_rows, lse - tgt_logit, 0.0)      # (chunk, 1)

        acc_ref[...] += jnp.sum(ce_rows, keepdims=True)                  # (1, 1)

    @pl.when(blk == pl.num_programs(1) - 1)
    def _():
        out_ref[...] = acc_ref[...]


def focal_loss(logits, target, *, alpha=1.0, gamma=2.0,
               block_n=None, chunk_n=None):
    """Pallas TPU implementation of FocalLoss.forward.

    Args:
      logits: (N, C) float array (f32 or bf16) of unnormalized logits.
      target: (N,) int array of class indices in [0, C).
    Returns:
      scalar float32 focal loss.
    """
    n, c = logits.shape
    itemsize = jnp.dtype(logits.dtype).itemsize
    align = 16 if itemsize < 4 else 8          # sublane granule (bf16 packs 2/row)
    cl = _round_up(c, 128)                     # lane-padded class width in VMEM

    # ---- per-generation VMEM budget -------------------------------------
    try:
        vmem_cap = int(pltpu.get_tpu_info().vmem_capacity_bytes)
    except Exception:
        vmem_cap = 64 << 20                    # conservative (v7x physical)
    if vmem_cap <= 0:
        vmem_cap = 64 << 20
    budget = min(vmem_cap // 2, 48 << 20)      # scoped budget for this kernel

    # Per-row / per-chunk VMEM accounting (lane-padded layouts, f32 temps).
    per_chunk_row = 4 * cl * 4 + 8 * 128 * 4           # (chunk,C) + (chunk,1) f32 temps
    per_block_row = 2 * cl * itemsize + 2 * 128 * 4    # 2x logits buf + 2x (bn,1) i32 buf

    n_align = _round_up(max(n, 1), align)

    if block_n is None:
        if chunk_n is None:
            chunk_n = min(512, max(align,
                                   ((budget // 3) // per_chunk_row) // align * align))
        chunk_n = max(align, min(_round_up(int(chunk_n), align), n_align))
        avail = budget - chunk_n * per_chunk_row - (2 << 20)
        rows = max(chunk_n, avail // per_block_row)
        block_n = max(chunk_n, rows // chunk_n * chunk_n)
    else:
        block_n = max(align, _round_up(int(block_n), align))
        if chunk_n is None:
            chunk_n = min(512, block_n)
        chunk_n = max(align, min(_round_up(int(chunk_n), align), block_n))
        block_n = _round_up(block_n, chunk_n)
    block_n = min(block_n, _round_up(n_align, chunk_n))

    total_blocks = -(-n // block_n)
    num_splits = 2 if total_blocks >= 2 else 1   # v7x: one split per TensorCore
    bps = -(-total_blocks // num_splits)         # blocks per split
    n_pad = num_splits * bps * block_n

    if n_pad != n:
        logits = jnp.pad(logits, ((0, n_pad - n), (0, 0)))
        target = jnp.pad(target, (0, n_pad - n))
    target_2d = target.astype(jnp.int32).reshape(n_pad, 1)

    footprint = block_n * per_block_row + chunk_n * per_chunk_row + (1 << 20)
    vmem_limit = int(max(8 << 20, min(vmem_cap - (4 << 20), footprint + (8 << 20))))

    kernel = functools.partial(
        _focal_ce_partial_kernel, n_rows=n, block_n=block_n, chunk_n=chunk_n,
        blocks_per_split=bps)

    partials = pl.pallas_call(
        kernel,
        out_shape=jax.ShapeDtypeStruct((num_splits, 1, 1), jnp.float32),
        grid_spec=pltpu.PrefetchScalarGridSpec(
            num_scalar_prefetch=0,
            grid=(num_splits, bps),
            in_specs=[
                pl.BlockSpec((block_n, c), lambda s, b: (s * bps + b, 0)),
                pl.BlockSpec((block_n, 1), lambda s, b: (s * bps + b, 0)),
            ],
            out_specs=pl.BlockSpec((None, 1, 1), lambda s, b: (s, 0, 0)),
            scratch_shapes=[pltpu.VMEM((1, 1), jnp.float32)],
        ),
        compiler_params=pltpu.CompilerParams(
            dimension_semantics=("parallel", "arbitrary"),
            vmem_limit_bytes=vmem_limit,
        ),
    )(logits, target_2d)

    # Scalar finalize in the wrapper: mean CE + focal transform.
    ce = jnp.sum(partials) / jnp.float32(n)
    pt = jnp.exp(-ce)
    base = jnp.maximum(1.0 - pt, 0.0)   # clamp: avoid pow of tiny negative
    g = float(gamma)
    if g.is_integer():
        mod = jax.lax.integer_pow(base, int(g))
    else:
        mod = base ** g
    return jnp.float32(alpha) * mod * ce


def _reference_focal_loss(logits, target, alpha=1.0, gamma=2.0):
    # Pure-JAX reference matching torch.nn.CrossEntropyLoss + focal transform.
    logits = logits.astype(jnp.float32)
    log_probs = jax.nn.log_softmax(logits, axis=-1)
    ce_per = -jnp.take_along_axis(log_probs, target[:, None].astype(jnp.int32),
                                  axis=-1)[:, 0]
    ce = jnp.mean(ce_per)
    pt = jnp.exp(-ce)
    return alpha * (1.0 - pt) ** gamma * ce


if __name__ == "__main__":
    # FocalLoss(alpha=1, gamma=2): alpha/gamma are the deterministic __init__
    # values; there are no learnable parameters.
    alpha, gamma = 1.0, 2.0
    keys = jax.random.split(jax.random.PRNGKey(0), 6)

    # 1) Tiny single-block path.
    n1, c1 = 8, 32
    lg1 = jax.random.normal(keys[0], (n1, c1), dtype=jnp.float32)
    tg1 = jax.random.randint(keys[1], (n1,), 0, c1, dtype=jnp.int32)
    out1 = jax.block_until_ready(focal_loss(lg1, tg1, alpha=alpha, gamma=gamma))
    ref1 = jax.block_until_ready(_reference_focal_loss(lg1, tg1, alpha, gamma))
    assert jnp.allclose(out1, ref1, atol=1e-5, rtol=1e-4), (out1, ref1)

    # 2) Multi-block path: 2-way core split + padded-tail masking.
    n2, c2 = 300, 32
    lg2 = jax.random.normal(keys[2], (n2, c2), dtype=jnp.float32)
    tg2 = jax.random.randint(keys[3], (n2,), 0, c2, dtype=jnp.int32)
    out2 = jax.block_until_ready(
        focal_loss(lg2, tg2, alpha=alpha, gamma=gamma, block_n=64))
    ref2 = jax.block_until_ready(_reference_focal_loss(lg2, tg2, alpha, gamma))
    assert jnp.allclose(out2, ref2, atol=1e-5, rtol=1e-4), (out2, ref2)

    # 3) Multi-chunk inner loop + bf16 ingestion (f32 accumulation inside).
    n3, c3 = 520, 48
    lg3 = jax.random.normal(keys[4], (n3, c3), dtype=jnp.float32).astype(jnp.bfloat16)
    tg3 = jax.random.randint(keys[5], (n3,), 0, c3, dtype=jnp.int32)
    out3 = jax.block_until_ready(
        focal_loss(lg3, tg3, alpha=alpha, gamma=gamma, block_n=128, chunk_n=64))
    ref3 = jax.block_until_ready(
        _reference_focal_loss(lg3.astype(jnp.float32), tg3, alpha, gamma))
    assert jnp.allclose(out3, ref3, atol=1e-4, rtol=1e-3), (out3, ref3)

    print("KERNEL_OK")
</pallas_src>

<mosaic_0001>
module attributes {stable_mosaic.version = 11 : i64} {
  func.func @_focal_ce_partial_kernel(%arg0: i32, %arg1: i32, %arg2: memref<8x32xf32, #tpu.memory_space<vmem>>, %arg3: memref<8x1xi32, #tpu.memory_space<vmem>>, %arg4: memref<1x1x1xf32, #tpu.memory_space<vmem>>, %arg5: memref<1x1xf32, #tpu.memory_space<vmem>>) attributes {dimension_semantics = [#tpu.dimension_semantics<parallel>, #tpu.dimension_semantics<arbitrary>], iteration_bounds = array<i64: 1, 1>, scalar_prefetch = 0 : i64, scratch_operands = 1 : i64, tpu.core_type = #tpu.core_type<tc>, window_params = [{transform_indices = @transform_0, window_bounds = array<i64: 8, 32>}, {transform_indices = @transform_1, window_bounds = array<i64: 8, 1>}, {transform_indices = @transform_2, window_bounds = array<i64: 1, 1, 1>}]} {
    %c0_i32 = arith.constant 0 : i32
    %0 = arith.cmpi eq, %arg1, %c0_i32 : i32
    %1 = arith.extui %0 : i1 to i32
    %c0_i32_0 = arith.constant 0 : i32
    %2 = arith.cmpi ne, %1, %c0_i32_0 : i32
    scf.if %2 {
      %cst_19 = arith.constant 0.000000e+00 : f32
      %50 = vector.broadcast %cst_19 : f32 to vector<1x1xf32>
      %c0_20 = arith.constant 0 : index
      %c0_21 = arith.constant 0 : index
      %51 = vector.load %arg5[%c0_20, %c0_21] : memref<1x1xf32, #tpu.memory_space<vmem>>, vector<1x1xf32>
      tpu.vector_store %arg5[%c0_20, %c0_21], %50 {strides = array<i32>} : memref<1x1xf32, #tpu.memory_space<vmem>>, vector<1x1xf32>,
    } else {
    }
    %c1_i32 = arith.constant 1 : i32
    %3 = arith.muli %arg0, %c1_i32 : i32
    %4 = arith.addi %3, %arg1 : i32
    %c8_i32 = arith.constant 8 : i32
    %5 = arith.muli %4, %c8_i32 : i32
    %c0_i32_1 = arith.constant 0 : i32
    %c1_i32_2 = arith.constant 1 : i32
    %6 = arith.muli %c0_i32_1, %c1_i32_2 : i32
    %c0_i32_3 = arith.constant 0 : i32
    %7 = arith.addi %c0_i32_3, %6 : i32
    %c8_i32_4 = arith.constant 8 : i32
    %8 = arith.muli %7, %c8_i32_4 : i32
    %9 = tpu.assume_multiple %8, 8 : i32
    %10 = arith.index_cast %9 : i32 to index
    %c0 = arith.constant 0 : index
    %11 = vector.load %arg2[%10, %c0] : memref<8x32xf32, #tpu.memory_space<vmem>>, vector<8x32xf32>
    %cst = arith.constant dense<0xFF800000> : vector<8xf32>
    %12 = vector.multi_reduction <maximumf>, %11, %cst [1] : vector<8x32xf32> to vector<8xf32>
    %13 = vector.shape_cast %12 : vector<8xf32> to vector<8x1xf32>
    %14 = vector.broadcast %13 : vector<8x1xf32> to vector<8x32xf32>
    %15 = arith.subf %11, %14 : vector<8x32xf32>
    %16 = math.exp %15 : vector<8x32xf32>
    %cst_5 = arith.constant dense<0.000000e+00> : vector<8xf32>
    %17 = vector.multi_reduction <add>, %16, %cst_5 [1] : vector<8x32xf32> to vector<8xf32>
    %18 = vector.shape_cast %17 : vector<8xf32> to vector<8x1xf32>
    %19 = math.log %18 : vector<8x1xf32>
    %20 = arith.addf %19, %13 : vector<8x1xf32>
    %21 = arith.index_cast %9 : i32 to index
    %c0_6 = arith.constant 0 : index
    %22 = vector.load %arg3[%21, %c0_6] : memref<8x1xi32, #tpu.memory_space<vmem>>, vector<8x1xi32>
    %23 = tpu.iota {dimensions = array<i32: 1>} : vector<8x32xi32>
    %24 = vector.broadcast %22 : vector<8x1xi32> to vector<8x32xi32>
    %25 = arith.cmpi eq, %23, %24 : vector<8x32xi32>
    %cst_7 = arith.constant 0.000000e+00 : f32
    %26 = vector.broadcast %cst_7 : f32 to vector<8x32xf32>
    %27 = arith.select %25, %11, %26 : vector<8x32xi1>, vector<8x32xf32>
    %cst_8 = arith.constant dense<0.000000e+00> : vector<8xf32>
    %28 = vector.multi_reduction <add>, %27, %cst_8 [1] : vector<8x32xf32> to vector<8xf32>
    %29 = vector.shape_cast %28 : vector<8xf32> to vector<8x1xf32>
    %30 = tpu.iota {dimensions = array<i32: 0>} : vector<8x1xi32>
    %31 = arith.addi %5, %9 : i32
    %32 = vector.broadcast %31 : i32 to vector<8x1xi32>
    %33 = arith.addi %30, %32 : vector<8x1xi32>
    %c8_i32_9 = arith.constant 8 : i32
    %34 = vector.broadcast %c8_i32_9 : i32 to vector<8x1xi32>
    %35 = arith.cmpi slt, %33, %34 : vector<8x1xi32>
    %36 = arith.subf %20, %29 : vector<8x1xf32>
    %cst_10 = arith.constant 0.000000e+00 : f32
    %37 = vector.broadcast %cst_10 : f32 to vector<8x1xf32>
    %38 = arith.select %35, %36, %37 : vector<8x1xi1>, vector<8x1xf32>
    %c0_11 = arith.constant 0 : index
    %c0_12 = arith.constant 0 : index
    %39 = vector.load %arg5[%c0_11, %c0_12] : memref<1x1xf32, #tpu.memory_space<vmem>>, vector<1x1xf32>
    %40 = vector.shape_cast %38 : vector<8x1xf32> to vector<1x8x1xf32>
    %cst_13 = arith.constant dense<0.000000e+00> : vector<1xf32>
    %41 = vector.multi_reduction <add>, %40, %cst_13 [1, 2] : vector<1x8x1xf32> to vector<1xf32>
    %42 = vector.shape_cast %41 : vector<1xf32> to vector<1x1x1xf32>
    %43 = vector.extract %42[0, 0, 0] : f32 from vector<1x1x1xf32>
    %44 = vector.broadcast %43 : f32 to vector<1x1xf32>
    %45 = arith.addf %39, %44 : vector<1x1xf32>
    %c0_14 = arith.constant 0 : index
    %c0_15 = arith.constant 0 : index
    %46 = vector.load %arg5[%c0_14, %c0_15] : memref<1x1xf32, #tpu.memory_space<vmem>>, vector<1x1xf32>
    tpu.vector_store %arg5[%c0_14, %c0_15], %45 {strides = array<i32>} : memref<1x1xf32, #tpu.memory_space<vmem>>, vector<1x1xf32>,
    %c1_i32_16 = arith.constant 1 : i32
    %c0_i32_17 = arith.constant 0 : i32
    %47 = arith.cmpi eq, %arg1, %c0_i32_17 : i32
    %48 = arith.extui %47 : i1 to i32
    %c0_i32_18 = arith.constant 0 : i32
    %49 = arith.cmpi ne, %48, %c0_i32_18 : i32
    scf.if %49 {
      %c0_19 = arith.constant 0 : index
      %c0_20 = arith.constant 0 : index
      %50 = vector.load %arg5[%c0_19, %c0_20] : memref<1x1xf32, #tpu.memory_space<vmem>>, vector<1x1xf32>
      %c0_21 = arith.constant 0 : index
      %c0_22 = arith.constant 0 : index
      %c0_23 = arith.constant 0 : index
      %51 = vector.load %arg4[%c0_21, %c0_22, %c0_23] : memref<1x1x1xf32, #tpu.memory_space<vmem>>, vector<1x1x1xf32>
      %52 = vector.shape_cast %51 : vector<1x1x1xf32> to vector<1x1xf32>
      %53 = vector.shape_cast %50 : vector<1x1xf32> to vector<1x1x1xf32>
      tpu.vector_store %arg4[%c0_21, %c0_22, %c0_23], %53 {strides = array<i32>} : memref<1x1x1xf32, #tpu.memory_space<vmem>>, vector<1x1x1xf32>,
    } else {
    }
    return
  }
  func.func @transform_0(%arg0: i32, %arg1: i32) -> (i32, i32) {
    %c1_i32 = arith.constant 1 : i32
    %0 = arith.muli %arg0, %c1_i32 : i32
    %1 = arith.addi %0, %arg1 : i32
    %c0_i32 = arith.constant 0 : i32
    %c0_i32_0 = arith.constant 0 : i32
    return %1, %c0_i32 : i32, i32
  }
  func.func @transform_1(%arg0: i32, %arg1: i32) -> (i32, i32) {
    %c1_i32 = arith.constant 1 : i32
    %0 = arith.muli %arg0, %c1_i32 : i32
    %1 = arith.addi %0, %arg1 : i32
    %c0_i32 = arith.constant 0 : i32
    %c0_i32_0 = arith.constant 0 : i32
    return %1, %c0_i32 : i32, i32
  }
  func.func @transform_2(%arg0: i32, %arg1: i32) -> (i32, i32, i32) {
    %c0_i32 = arith.constant 0 : i32
    %c0_i32_0 = arith.constant 0 : i32
    %c0_i32_1 = arith.constant 0 : i32
    return %arg0, %c0_i32, %c0_i32_0 : i32, i32, i32
  }
}

</mosaic_0001>

<llo_original>
// kernel: tpu_custom_call.1
$region0: #{tpu_custom_call.1}
  #allocation0 [shape = 'u32[]', space=smem, size = 0x4, offset = 0x4, fixed_abs, tag = 'smem constant byte address 0x4 - core index']
  #allocation1 [shape = 'u32[144,128]{1,0:T(1,128)}', space=vmem, size = 0x12000, scoped, tag = 'internal scratch']
  #allocation2 [shape = 'f32[1,1]{1,0:T(1,128)}', space=vmem, size = 0x200, scoped, tag = 'scratch operand']
  %s0 = inlined_call_operand.vmem [shape: f32[8,32], index: 0, kind: input, shape index: {}]
  %s1 = inlined_call_operand.vmem [shape: s32[8,1], index: 1, kind: input, shape index: {}]
  %s2 = inlined_call_operand.hbm [shape: f32[1,1,1], index: 2, kind: output, shape index: {}]
  %s3 = sld [smem:[#allocation0]]
  $region26: #{tpu_custom_call.1} parent=0
    _
  %s5 = ssub.s32 1, %s3
  %s6 = scalar_select 0, %s5, %s3
  $region1: #{tpu_custom_call.1} parent=0
    #allocation3 [shape = 'u8[512]{0}', space=vmem, size = 0x400, scoped, tag = 'output window, operand 0, single buffered']
    #allocation4 [shape = 's32[1]{0}', space=sflag, size = 0x4, scoped, tag = 'scoped memory for tpu_custom_call.1']
    %7 = vsyncpa [#allocation4], 0
    // Predicated region
    $region2: #{tpu_custom_call.1} parent=1 // pred_check
      _
    $region3: #{tpu_custom_call.1} parent=1 // pred_check_branch
      %9 = sbr.rel (0) target = $region5
    $region4: #{tpu_custom_call.1} parent=1 // pred_region
      %s10 = sadd.s32 0, 0
      %p11 = scmp.lt.s32.totalorder %s10, 0
      %s12 = scalar_select %p11, %s10, 0
      %s13 = smul.addr %s12, 8
      %s14 = scalar_lea.vmem %s0, %s13
      %s15 = sadd.s32 0, 0
    $region5: #{tpu_custom_call.1} parent=1 // pred_fallthru
      _
    // Predicated region
    $region6: #{tpu_custom_call.1} parent=1 // pred_check
      _
    $region7: #{tpu_custom_call.1} parent=1 // pred_check_branch
      %17 = sbr.rel (0) target = $region9
    $region8: #{tpu_custom_call.1} parent=1 // pred_region
      %s18 = sadd.s32 0, 0
      %p19 = scmp.lt.s32.totalorder %s18, 0
      %s20 = scalar_select %p19, %s18, 0
      %s21 = smul.addr %s20, 8
      %s22 = scalar_lea.vmem %s1, %s21
      %s23 = sadd.s32 0, 0
    $region9: #{tpu_custom_call.1} parent=1 // pred_fallthru
      _
    %s24 = sadd.s32 0, 0
    %p25 = scmp.lt.s32.totalorder %s24, 0
    %s26 = scalar_select %p25, %s24, 0
    %s27 = smul.addr %s26, 8
    %s28 = scalar_lea.vmem %s0, %s27
    %s29 = sadd.s32 0, 0
    %p30 = scmp.lt.s32.totalorder %s29, 0
    %s31 = scalar_select %p30, %s29, 0
    %s32 = smul.addr %s31, 8
    %s33 = scalar_lea.vmem %s1, %s32
    %s34 = sadd.s32 0, 0
    %p35 = scmp.lt.s32.totalorder %s34, 0
    %s36 = scalar_select %p35, %s34, 0
    %s37 = smul.addr %s36, 8
    %s38 = scalar_lea.vmem %s0, %s37
    %s39 = sadd.s32 0, 0
    %s40 = sadd.s32 0, 0
    %p41 = scmp.lt.s32.totalorder %s40, 0
    %s42 = scalar_select %p41, %s40, 0
    %s43 = smul.addr %s42, 8
    %s44 = scalar_lea.vmem %s1, %s43
    %s45 = sadd.s32 0, 0
    %p46 = scmp.eq.s32.totalorder 0, 0
    // Predicated region
    $region10: #{tpu_custom_call.1} parent=1 // pred_check
      %p47 = pneg %p46
    $region11: #{tpu_custom_call.1} parent=1 // pred_check_branch
      %49 = sbr.rel (%p47) target = $region13
    $region12: #{tpu_custom_call.1} parent=1 // pred_region
      %vm50 = vcmask 0
      %51 = vst.msk [vmem:[#allocation2] sm:$0x1] %vm50, 0.0
    $region13: #{tpu_custom_call.1} parent=1 // pred_fallthru
      _
    %s52 = sadd.s32 0, 0
    %s53 = smul.u32 %s52, 8
    %v54 = vld [vmem:[%s38] sm:$0xff]
    %vm55 = vcmask 261120
    %v56 = vsel %vm55, %v54, -inf
    %57 = vmax.xlane.f32.xlu0 %v56
    %v58 = vpop.xlane.xlu0 %57
    %v59 = vsub.f32 %v54, %v58
    %v60 = vmul.f32 %v59, 1.442695
    %v61 = vpow.pop %v60
    %v62 = vsel %vm55, %v61, 0.0
    %63 = vadd.xlane.f32.xlu0 %v62
    %v64 = vpop.xlane.xlu0 %63
    %v65 = vlog2.pop %v64
    %v66 = vmul.f32 %v65, 0.6931472
    %v67 = vadd.f32 %v66, %v58
    %v68 = vld [vmem:[%s44] sm:$0xff]
    %v69 = vlaneseq
    %v70 = vand.u32 %v69, 127
    %71 = vset.pattern.permute.xlu0 0
    %72 = vperm.xlu0 %71, %v68
    %v73 = vpop.permute.xlu0 %72
    %vm74 = vcmp.eq.s32.totalorder %v70, %v73
    %v75 = vsel %vm74, %v54, 0.0
    %v76 = vsel %vm55, %v75, 0.0
    %77 = vadd.xlane.f32.xlu0 %v76
    %v78 = vpop.xlane.xlu0 %77
    %v79 = vlaneseq
    %v80 = vshrl.u32 %v79, 7
    %s81 = sadd.s32 %s53, 0
    %v82 = vstv %s81
    %v83 = vadd.s32 %v80, %v82
    %vm84 = vcmp.lt.s32.totalorder %v83, 8
    %v85 = vsub.f32 %v67, %v78
    %v86 = vsel %vm84, %v85, 0.0
    %v87 = vld [vmem:[#allocation2] sm:$0x1]
    %vm88 = vcmask 7168
    %v89 = vsel %vm88, %v86, 0.0
    %90 = vadd.xlane.f32.xlu0 %v89
    %v91 = vpop.xlane.xlu0 %90
    %v92 = vrot.slane %v91, 4
    %v93 = vadd.f32 %v91, %v92
    %v94 = vrot.slane %v93, 2
    %v95 = vadd.f32 %v93, %v94
    %v96 = vrot.slane %v95, 1
    %v97 = vadd.f32 %v95, %v96
    %s98 = vtos %v97
    %v99 = vstv %s98
    %v100 = vadd.f32 %v87, %v99
    %vm101 = vcmask 0
    %102 = vst.msk [vmem:[#allocation2] sm:$0x1] %vm101, %v100
    // Predicated region
    $region14: #{tpu_custom_call.1} parent=1 // pred_check
      %p103 = pneg %p46
    $region15: #{tpu_custom_call.1} parent=1 // pred_check_branch
      %105 = sbr.rel (%p103) target = $region17
    $region16: #{tpu_custom_call.1} parent=1 // pred_region
      %v106 = vld [vmem:[#allocation2] sm:$0x1]
      %107 = vst.msk [vmem:[#allocation3] sm:$0x1] %vm101, %v106
    $region17: #{tpu_custom_call.1} parent=1 // pred_fallthru
      _
    // Predicated region
    $region18: #{tpu_custom_call.1} parent=1 // pred_check
      _
    $region19: #{tpu_custom_call.1} parent=1 // pred_check_branch
      %109 = sbr.rel (0) target = $region21
    $region20: #{tpu_custom_call.1} parent=1 // pred_region
      %s111 = ssub.s32 16, 16
      %112 = vsyncadd [#allocation4], %s111
      %s114 = sshll.u32 [#allocation3], 4
      %s115 = int_to_ptr.vmem [resolvable:$true] %s114
      %117 = dma.vmem_to_hbm [thread:$0]  %s115, 16, %s2, [#allocation4]
    $region21: #{tpu_custom_call.1} parent=1 // pred_fallthru
      _
    // Predicated region
    $region22: #{tpu_custom_call.1} parent=1 // pred_check
      _
    $region23: #{tpu_custom_call.1} parent=1 // pred_check_branch
      %119 = sbr.rel (0) target = $region25
    $region24: #{tpu_custom_call.1} parent=1 // pred_region
      %120 = dma.done [#allocation4], 16
    $region25: #{tpu_custom_call.1} parent=1 // pred_fallthru
      _
    %121 = vsyncpa [#allocation4], 1

</llo_original>
